<compile_context>
chip_gen: v7x
topology: tpu7x:2x2x1
jax: 0.10.0
libtpu: 0.0.40
codegen_flags: <defaults>
</compile_context>

<pallas_src>
import jax
import jax.numpy as jnp
from jax.experimental import pallas as pl
from jax.experimental.pallas import tpu as pltpu


_VPU_PATH_MAX_WEIGHTS = 64            # c_in*c_out above this -> MXU path
_DATA_VMEM_BUDGET = 16 * 1024 * 1024  # double-buffered data blocks (padded)
_VMEM_LIMIT_BYTES = 32 * 1024 * 1024  # scoped VMEM limit passed to Mosaic
_TARGET_STEP_BYTES = 4 * 1024 * 1024  # per-grid-step DMA target (overhead amortization)


def _cdiv(a, b):
    return -(-a // b)


def _round_up(x, m):
    return _cdiv(x, m) * m


def _sublane(itemsize):
    # Sublane tile rows: f32 -> 8, bf16 -> 16, int8 -> 32.
    return max(8, 8 * (4 // max(1, itemsize)))


def _conv1x1_vpu_kernel(w_ref, x_ref, o_ref):
    """Small-channel path: unrolled VPU broadcast-MAC, no MXU.

    w_ref: (C_out, C_in) float32 weights in SMEM (read as scalars).
    x_ref: (nb, C_in, tr, 128) input block  (rows x 128-lane spatial layout).
    o_ref: (nb, C_out, tr, 128) output block.
    """
    c_in = x_ref.shape[1]
    c_out = o_ref.shape[1]
    for o in range(c_out):
        acc = w_ref[o, 0] * x_ref[:, 0:1, :, :].astype(jnp.float32)
        for c in range(1, c_in):
            acc = acc + w_ref[o, c] * x_ref[:, c:c + 1, :, :].astype(jnp.float32)
        o_ref[:, o:o + 1, :, :] = acc.astype(o_ref.dtype)


def _conv1x1_mxu_kernel(w_ref, x_ref, o_ref):
    """Large-channel path: (C_out, C_in) @ (C_in, TS) on the MXU.

    The weight block index_map is constant, so the weight stays resident in
    VMEM across the whole grid (its double buffer is counted in the budget).
    """
    # TODO(synk): for weights comparable to VMEM add K/N tiling with an f32
    # VMEM accumulator (pl.when init/finalize) instead of a resident weight.
    o_ref[...] = jnp.dot(
        w_ref[...], x_ref[...], preferred_element_type=jnp.float32
    ).astype(o_ref.dtype)


def _choose_vpu_blocks(n, c_in, c_out, r, itemsize):
    """Pick (batch_block nb, row_block tr) for the (N, C, R, 128) layout."""
    sub = _sublane(itemsize)
    row_bytes = (c_in + c_out) * 128 * itemsize     # one 128-lane row, one image
    # Rows per block (nb=1) within the double-buffered, sublane-padded budget.
    max_rows = _DATA_VMEM_BUDGET // (2 * row_bytes)
    max_rows = max(sub, (max_rows // sub) * sub)
    tr = r if r <= max_rows else max_rows           # full extent or multiple of sub
    tr_pad = _round_up(tr, sub)
    # Fold batch until the step reaches the DMA target (or budget / N).
    nb_budget = max(1, _DATA_VMEM_BUDGET
                    // (2 * (c_in + c_out) * tr_pad * 128 * itemsize))
    nb_target = max(1, _cdiv(_TARGET_STEP_BYTES, row_bytes * tr))
    nb = max(1, min(n, nb_budget, nb_target))
    # Keep >= 2 grid steps when N > 1 so v7x's two TensorCores both get work.
    if nb >= n and _cdiv(r, tr) == 1 and n > 1:
        nb = _cdiv(n, 2)
    return nb, tr


def _choose_mxu_spatial_tile(c_in, c_out, hw, itemsize, w_bytes):
    """Spatial tile (lanes) for the MXU path, padding- and weight-aware."""
    if hw <= 128:
        return hw                                   # full-extent spatial block
    sub = _sublane(itemsize)
    per_lane = 2 * (_round_up(c_in, sub) + _round_up(c_out, sub)) * itemsize
    avail = max(per_lane * 128, _DATA_VMEM_BUDGET - 2 * w_bytes)
    cap = max(128, (avail // per_lane) // 128 * 128)
    return min((hw // 128) * 128, cap)


@jax.jit
def conv1x1_forward(x_nchw, weight_oc_ic):
    """1x1 conv, bias=False, eval-mode dropout (identity).

    x_nchw:       (N, C_in, H, W)
    weight_oc_ic: (C_out, C_in)  (Conv2d weight squeezed from (C_out,C_in,1,1))
    returns:      (N, C_out, H, W)
    """
    n, c_in, h, w = x_nchw.shape
    c_out = weight_oc_ic.shape[0]
    hw = h * w
    itemsize = x_nchw.dtype.itemsize
    out_dtype = x_nchw.dtype

    cost = pl.CostEstimate(
        flops=2 * n * hw * c_in * c_out,
        transcendentals=0,
        bytes_accessed=(n * c_in * hw + n * c_out * hw) * itemsize
        + c_out * c_in * weight_oc_ic.dtype.itemsize,
    )
    cparams = pltpu.CompilerParams(
        dimension_semantics=("parallel", "parallel"),
        vmem_limit_bytes=_VMEM_LIMIT_BYTES,
    )

    if c_in * c_out <= _VPU_PATH_MAX_WEIGHTS:
        # ---------- small-channel VPU path (the FID Conv1x1 case) ----------
        hw_pad = _round_up(hw, 128)
        x3 = x_nchw.reshape(n, c_in, hw)
        if hw_pad != hw:
            x3 = jnp.pad(x3, ((0, 0), (0, 0), (0, hw_pad - hw)))
        r = hw_pad // 128
        x4 = x3.reshape(n, c_in, r, 128)

        nb, tr = _choose_vpu_blocks(n, c_in, c_out, r, itemsize)
        grid = (_cdiv(n, nb), _cdiv(r, tr))

        out4 = pl.pallas_call(
            _conv1x1_vpu_kernel,
            out_shape=jax.ShapeDtypeStruct((n, c_out, r, 128), out_dtype),
            grid_spec=pltpu.PrefetchScalarGridSpec(
                num_scalar_prefetch=0,
                grid=grid,
                in_specs=[
                    pl.BlockSpec(memory_space=pltpu.MemorySpace.SMEM),
                    pl.BlockSpec((nb, c_in, tr, 128),
                                 lambda b, s: (b, 0, s, 0)),
                ],
                out_specs=pl.BlockSpec((nb, c_out, tr, 128),
                                       lambda b, s: (b, 0, s, 0)),
            ),
            compiler_params=cparams,
            cost_estimate=cost,
        )(weight_oc_ic.astype(jnp.float32), x4)

        out3 = out4.reshape(n, c_out, hw_pad)
        if hw_pad != hw:
            out3 = out3[:, :, :hw]
        return out3.reshape(n, c_out, h, w)

    # ---------------------- large-channel MXU path ----------------------
    x3 = x_nchw.reshape(n, c_in, hw)
    w_bytes = c_out * c_in * weight_oc_ic.dtype.itemsize
    ts = _choose_mxu_spatial_tile(c_in, c_out, hw, itemsize, w_bytes)
    grid = (n, _cdiv(hw, ts))

    out3 = pl.pallas_call(
        _conv1x1_mxu_kernel,
        out_shape=jax.ShapeDtypeStruct((n, c_out, hw), out_dtype),
        grid_spec=pltpu.PrefetchScalarGridSpec(
            num_scalar_prefetch=0,
            grid=grid,
            in_specs=[
                pl.BlockSpec((c_out, c_in), lambda b, s: (0, 0)),
                pl.BlockSpec((None, c_in, ts), lambda b, s: (b, 0, s)),
            ],
            out_specs=pl.BlockSpec((None, c_out, ts), lambda b, s: (b, 0, s)),
        ),
        compiler_params=cparams,
        cost_estimate=cost,
    )(weight_oc_ic, x3)
    return out3.reshape(n, c_out, h, w)


if __name__ == "__main__":
    key = jax.random.PRNGKey(0)
    k_x, k_w, k_x2, k_w2 = jax.random.split(key, 4)

    # ---- primary test: the FID Conv1x1 shape (tiny channels, VPU path) ----
    N, C_IN, H, W = 2, 4, 16, 16
    C_OUT = 1
    x = jax.random.normal(k_x, (N, C_IN, H, W), dtype=jnp.float32)
    bound = 1.0 / (C_IN ** 0.5)  # matches torch kaiming-uniform bound for 1x1
    weight = jax.random.uniform(
        k_w, (C_OUT, C_IN), dtype=jnp.float32, minval=-bound, maxval=bound
    )

    out = conv1x1_forward(x, weight)
    jax.block_until_ready(out)
    ref = jnp.einsum("oc,nchw->nohw", weight, x, precision="highest")
    assert out.shape == (N, C_OUT, H, W), out.shape
    assert jnp.allclose(out, ref, atol=1e-5, rtol=1e-5), "VPU path mismatch"

    # ---- secondary test: larger channel count exercises the MXU path ----
    N2, C_IN2, C_OUT2, H2, W2 = 2, 256, 8, 16, 16
    x2 = jax.random.normal(k_x2, (N2, C_IN2, H2, W2), dtype=jnp.float32)
    bound2 = 1.0 / (C_IN2 ** 0.5)
    weight2 = jax.random.uniform(
        k_w2, (C_OUT2, C_IN2), dtype=jnp.float32, minval=-bound2, maxval=bound2
    )
    out2 = conv1x1_forward(x2, weight2)
    jax.block_until_ready(out2)
    ref2 = jnp.einsum("oc,nchw->nohw", weight2, x2, precision="highest")
    assert out2.shape == (N2, C_OUT2, H2, W2), out2.shape
    # Looser tolerance: kernel dot uses default MXU precision vs highest ref.
    assert jnp.allclose(out2, ref2, atol=1e-2, rtol=1e-2), "MXU path mismatch"

    print("KERNEL_OK")
</pallas_src>

<mosaic_0001>
module attributes {stable_mosaic.version = 11 : i64} {
  func.func @_conv1x1_vpu_kernel(%arg0: i32, %arg1: i32, %arg2: memref<1x4xf32, #tpu.memory_space<smem>>, %arg3: memref<1x4x2x128xf32, #tpu.memory_space<vmem>>, %arg4: memref<1x1x2x128xf32, #tpu.memory_space<vmem>>) attributes {dimension_semantics = [#tpu.dimension_semantics<parallel>, #tpu.dimension_semantics<parallel>], iteration_bounds = array<i64: 2, 1>, scalar_prefetch = 0 : i64, scratch_operands = 0 : i64, tpu.core_type = #tpu.core_type<tc>, window_params = [{transform_indices = @transform_0, window_bounds = array<i64: 1, 4>}, {transform_indices = @transform_1, window_bounds = array<i64: 1, 4, 2, 128>}, {transform_indices = @transform_2, window_bounds = array<i64: 1, 1, 2, 128>}]} {
    %c0 = arith.constant 0 : index
    %c0_0 = arith.constant 0 : index
    %0 = memref.load %arg2[%c0, %c0_0] : memref<1x4xf32, #tpu.memory_space<smem>>
    %c0_1 = arith.constant 0 : index
    %c0_2 = arith.constant 0 : index
    %c0_3 = arith.constant 0 : index
    %c0_4 = arith.constant 0 : index
    %1 = vector.load %arg3[%c0_1, %c0_2, %c0_3, %c0_4] : memref<1x4x2x128xf32, #tpu.memory_space<vmem>>, vector<1x1x2x128xf32>
    %2 = vector.broadcast %0 : f32 to vector<1x1x2x128xf32>
    %3 = arith.mulf %2, %1 : vector<1x1x2x128xf32>
    %c0_5 = arith.constant 0 : index
    %c1 = arith.constant 1 : index
    %4 = memref.load %arg2[%c0_5, %c1] : memref<1x4xf32, #tpu.memory_space<smem>>
    %c0_6 = arith.constant 0 : index
    %c1_7 = arith.constant 1 : index
    %c0_8 = arith.constant 0 : index
    %c0_9 = arith.constant 0 : index
    %5 = vector.load %arg3[%c0_6, %c1_7, %c0_8, %c0_9] : memref<1x4x2x128xf32, #tpu.memory_space<vmem>>, vector<1x1x2x128xf32>
    %6 = vector.broadcast %4 : f32 to vector<1x1x2x128xf32>
    %7 = arith.mulf %6, %5 : vector<1x1x2x128xf32>
    %8 = arith.addf %3, %7 : vector<1x1x2x128xf32>
    %c0_10 = arith.constant 0 : index
    %c2 = arith.constant 2 : index
    %9 = memref.load %arg2[%c0_10, %c2] : memref<1x4xf32, #tpu.memory_space<smem>>
    %c0_11 = arith.constant 0 : index
    %c2_12 = arith.constant 2 : index
    %c0_13 = arith.constant 0 : index
    %c0_14 = arith.constant 0 : index
    %10 = vector.load %arg3[%c0_11, %c2_12, %c0_13, %c0_14] : memref<1x4x2x128xf32, #tpu.memory_space<vmem>>, vector<1x1x2x128xf32>
    %11 = vector.broadcast %9 : f32 to vector<1x1x2x128xf32>
    %12 = arith.mulf %11, %10 : vector<1x1x2x128xf32>
    %13 = arith.addf %8, %12 : vector<1x1x2x128xf32>
    %c0_15 = arith.constant 0 : index
    %c3 = arith.constant 3 : index
    %14 = memref.load %arg2[%c0_15, %c3] : memref<1x4xf32, #tpu.memory_space<smem>>
    %c0_16 = arith.constant 0 : index
    %c3_17 = arith.constant 3 : index
    %c0_18 = arith.constant 0 : index
    %c0_19 = arith.constant 0 : index
    %15 = vector.load %arg3[%c0_16, %c3_17, %c0_18, %c0_19] : memref<1x4x2x128xf32, #tpu.memory_space<vmem>>, vector<1x1x2x128xf32>
    %16 = vector.broadcast %14 : f32 to vector<1x1x2x128xf32>
    %17 = arith.mulf %16, %15 : vector<1x1x2x128xf32>
    %18 = arith.addf %13, %17 : vector<1x1x2x128xf32>
    %c0_20 = arith.constant 0 : index
    %c0_21 = arith.constant 0 : index
    %c0_22 = arith.constant 0 : index
    %c0_23 = arith.constant 0 : index
    %19 = vector.load %arg4[%c0_20, %c0_21, %c0_22, %c0_23] : memref<1x1x2x128xf32, #tpu.memory_space<vmem>>, vector<1x1x2x128xf32>
    tpu.vector_store %arg4[%c0_20, %c0_21, %c0_22, %c0_23], %18 {strides = array<i32>} : memref<1x1x2x128xf32, #tpu.memory_space<vmem>>, vector<1x1x2x128xf32>,
    return
  }
  func.func @transform_0(%arg0: i32, %arg1: i32) -> (i32, i32) {
    %c0_i32 = arith.constant 0 : i32
    %c0_i32_0 = arith.constant 0 : i32
    %c0_i32_1 = arith.constant 0 : i32
    return %c0_i32, %c0_i32_0 : i32, i32
  }
  func.func @transform_1(%arg0: i32, %arg1: i32) -> (i32, i32, i32, i32) {
    %c0_i32 = arith.constant 0 : i32
    %c0_i32_0 = arith.constant 0 : i32
    %c0_i32_1 = arith.constant 0 : i32
    return %arg0, %c0_i32, %arg1, %c0_i32_0 : i32, i32, i32, i32
  }
  func.func @transform_2(%arg0: i32, %arg1: i32) -> (i32, i32, i32, i32) {
    %c0_i32 = arith.constant 0 : i32
    %c0_i32_0 = arith.constant 0 : i32
    %c0_i32_1 = arith.constant 0 : i32
    return %arg0, %c0_i32, %arg1, %c0_i32_0 : i32, i32, i32, i32
  }
}

</mosaic_0001>

<llo_original>
// kernel: conv1x1_forward.1
$region0: #{conv1x1_forward.1}
  #allocation0 [shape = 'u32[]', space=smem, size = 0x4, offset = 0x4, fixed_abs, tag = 'smem constant byte address 0x4 - core index']
  #allocation1 [shape = 'u32[144,128]{1,0:T(1,128)}', space=vmem, size = 0x12000, scoped, tag = 'internal scratch']
  %s0 = inlined_call_operand.vmem [shape: f32[1,4], index: 0, kind: input, shape index: {}]
  %s1 = inlined_call_operand.vmem [shape: f32[2,4,2,128], index: 1, kind: input, shape index: {}]
  %s2 = inlined_call_operand.vmem [shape: f32[2,1,2,128], index: 2, kind: output, shape index: {}]
  %s3 = sld [smem:[#allocation0]]
  $region45: #{conv1x1_forward.1} parent=0
    _
  %s5 = ssub.s32 1, %s3
  %s6 = scalar_select 0, %s5, %s3
  $region1: #{conv1x1_forward.1} parent=0
    #allocation2 [shape = 'u8[512]{0}', space=smem, size = 0x200, scoped, tag = 'input window, operand 0, single buffered']
    #allocation3 [shape = 's32[2]{0}', space=sflag, size = 0x8, scoped, tag = 'scoped memory for conv1x1_forward.1']
    %7 = vsyncpa [#allocation3], 0
    loop: start=0, step=1, limit=4
    $region2: #{conv1x1_forward.1} parent=1 // loop_pre_header
      _
    $region3: #{conv1x1_forward.1} parent=1 // loop_header
      %s9 = sphi 0, %s13
      %p10 = scmp.ge.s32.totalorder %s9, 4
      %s16 = sphi 0, %s28
      %s17 = sphi 0, %s24
      %s18 = sphi 0, %s16
      %s19 = sphi 0, %s17
      %s20 = sphi 0, %s18
      %s21 = sphi 0, %s19
      %s29 = sphi 0, %s29
      %s31 = sphi 0, %s29
      %s32 = sphi 0, %s31
      %s46 = sphi 0, %s32
      %s54 = sphi 0, %s56
      %s57 = sphi 0, %s54
      %s58 = sphi 0, %s57
      %s74 = sphi 0, %s58
      %s82 = sphi 0, %s84
      %s85 = sphi 0, %s82
      %s86 = sphi 0, %s85
      %s102 = sphi 0, %s86
    $region4: #{conv1x1_forward.1} parent=1 // loop_header_branch
      %12 = sbr.rel (%p10) target = $region8
    $region5: #{conv1x1_forward.1} parent=1 // loop_body
      %s14 = ssub.s32 %s9, 1
      %s15 = ssub.s32 %s9, 2
      %s22 = sadd.s32 1, %s17
      %p23 = scmp.ge.s32.totalorder %s22, 1
      %s24 = scalar_select %p23, 0, %s22
      %s25 = sadd.s32 1, %s16
      %s26 = scalar_select %p23, %s25, %s16
      %p27 = scmp.ge.s32.totalorder %s26, 2
      %s28 = scalar_select %p27, 0, %s26
      %s30 = sadd.s32 %s29, 1
      %p33 = scmp.eq.s32.totalorder %s9, 1
      %p34 = scmp.ne.s32.totalorder %s29, %s31
      %p35 = scmp.eq.s32.totalorder %s9, 0
      %p36 = por %p34, %p35
      %p37 = scmp.ne.s32.totalorder %s29, %s31
      %p38 = scmp.eq.s32.totalorder %s14, 1
      %p39 = por %p37, %p38
      %p40 = scmp.ne.s32.totalorder %s31, %s32
      %p41 = scmp.eq.s32.totalorder %s14, 0
      %p42 = por %p40, %p41
      %p43 = scmp.ne.s32.totalorder %s31, %s32
      %p44 = scmp.eq.s32.totalorder %s15, 1
      %p45 = por %p43, %p44
      %p47 = scmp.ne.s32.totalorder %s32, %s46
      %p48 = scmp.eq.s32.totalorder %s15, 0
      %p49 = por %p47, %p48
      %s50 = ssub.s32 %s16, %s28
      %s51 = ssub.s32 %s17, %s24
      %s52 = sor.u32 %s50, %s51
      %p53 = scmp.eq.s32.totalorder %s52, 0
      %s55 = sadd.s32 %s54, 1
      %s56 = scalar_select %p53, %s54, %s55
      %p59 = pneg %p53
      %p60 = scmp.eq.s32.totalorder %s9, 1
      %p61 = por %p59, %p60
      %p62 = scmp.ne.s32.totalorder %s54, %s57
      %p63 = scmp.eq.s32.totalorder %s9, 0
      %p64 = por %p62, %p63
      %p65 = scmp.ne.s32.totalorder %s54, %s57
      %p66 = scmp.eq.s32.totalorder %s14, 1
      %p67 = por %p65, %p66
      %p68 = scmp.ne.s32.totalorder %s57, %s58
      %p69 = scmp.eq.s32.totalorder %s14, 0
      %p70 = por %p68, %p69
      %p71 = scmp.ne.s32.totalorder %s57, %s58
      %p72 = scmp.eq.s32.totalorder %s15, 1
      %p73 = por %p71, %p72
      %p75 = scmp.ne.s32.totalorder %s58, %s74
      %p76 = scmp.eq.s32.totalorder %s15, 0
      %p77 = por %p75, %p76
      %s78 = ssub.s32 %s16, %s28
      %s79 = ssub.s32 %s17, %s24
      %s80 = sor.u32 %s78, %s79
      %p81 = scmp.eq.s32.totalorder %s80, 0
      %s83 = sadd.s32 %s82, 1
      %s84 = scalar_select %p81, %s82, %s83
      %p87 = pneg %p81
      %p88 = scmp.eq.s32.totalorder %s9, 1
      %p89 = por %p87, %p88
      %p90 = scmp.ne.s32.totalorder %s82, %s85
      %p91 = scmp.eq.s32.totalorder %s9, 0
      %p92 = por %p90, %p91
      %p93 = scmp.ne.s32.totalorder %s82, %s85
      %p94 = scmp.eq.s32.totalorder %s14, 1
      %p95 = por %p93, %p94
      %p96 = scmp.ne.s32.totalorder %s85, %s86
      %p97 = scmp.eq.s32.totalorder %s14, 0
      %p98 = por %p96, %p97
      %p99 = scmp.ne.s32.totalorder %s85, %s86
      %p100 = scmp.eq.s32.totalorder %s15, 1
      %p101 = por %p99, %p100
      %p103 = scmp.ne.s32.totalorder %s86, %s102
      %p104 = scmp.eq.s32.totalorder %s15, 0
      %p105 = por %p103, %p104
      %p106 = scmp.le.s32.totalorder 1, %s9
      %p107 = scmp.lt.s32.totalorder %s9, 3
      %p108 = pnand %p106, %p107
      %p109 = pneg %p108
      // Predicated region
      $region9: #{conv1x1_forward.1} parent=5 // pred_check
        _
      $region10: #{conv1x1_forward.1} parent=5 // pred_check_branch
        %111 = sbr.rel (%p108) target = $region12
      $region11: #{conv1x1_forward.1} parent=5 // pred_region
        %s112 = ssub.s32 %s9, 1
        // Predicated region
        $region13: #{conv1x1_forward.1} parent=11 // pred_check
          %p113 = pneg %p42
        $region14: #{conv1x1_forward.1} parent=11 // pred_check_branch
          %115 = sbr.rel (%p113) target = $region16
        $region15: #{conv1x1_forward.1} parent=11 // pred_region
          %s117 = ssub.s32 16, 16
          %118 = vsyncadd [#allocation3], %s117
          %s120 = sshll.u32 %s0, 4
          %s121 = int_to_ptr.vmem [resolvable:$true] %s120
          %123 = dma.vmem_to_smem %s121, 16, [#allocation2], [#allocation3]
        $region16: #{conv1x1_forward.1} parent=11 // pred_fallthru
          _
      $region12: #{conv1x1_forward.1} parent=5 // pred_fallthru
        _
      %p124 = scmp.lt.s32.totalorder %s9, 2
      // Predicated region
      $region17: #{conv1x1_forward.1} parent=5 // pred_check
        %p125 = pneg %p124
      $region18: #{conv1x1_forward.1} parent=5 // pred_check_branch
        %127 = sbr.rel (%p125) target = $region20
      $region19: #{conv1x1_forward.1} parent=5 // pred_region
        // Predicated region
        $region21: #{conv1x1_forward.1} parent=19 // pred_check
          %p128 = pneg %p64
        $region22: #{conv1x1_forward.1} parent=19 // pred_check_branch
          %130 = sbr.rel (%p128) target = $region24
        $region23: #{conv1x1_forward.1} parent=19 // pred_region
          %p131 = scmp.lt.s32.totalorder %s16, 1
          %s132 = scalar_select %p131, %s16, 1
          %p133 = scmp.lt.s32.totalorder %s17, 0
          %s134 = scalar_select %p133, %s17, 0
          %s135 = smul.addr %s132, 4
          %s136 = sadd.s32 %s134, %s135
          %s137 = smul.addr %s136, 2
          %s138 = scalar_lea.vmem %s1, %s137
        $region24: #{conv1x1_forward.1} parent=19 // pred_fallthru
          _
      $region20: #{conv1x1_forward.1} parent=5 // pred_fallthru
        _
      %p139 = scmp.le.s32.totalorder 1, %s9
      %p140 = scmp.lt.s32.totalorder %s9, 3
      %p141 = pnand %p139, %p140
      %p142 = pneg %p141
      // Predicated region
      $region25: #{conv1x1_forward.1} parent=5 // pred_check
        _
      $region26: #{conv1x1_forward.1} parent=5 // pred_check_branch
        %144 = sbr.rel (%p141) target = $region28
      $region27: #{conv1x1_forward.1} parent=5 // pred_region
        %s145 = ssub.s32 %s9, 1
        // Predicated region
        $region29: #{conv1x1_forward.1} parent=27 // pred_check
          %p146 = pneg %p42
        $region30: #{conv1x1_forward.1} parent=27 // pred_check_branch
          %148 = sbr.rel (%p146) target = $region32
        $region31: #{conv1x1_forward.1} parent=27 // pred_region
          %149 = dma.done [#allocation3], 16
        $region32: #{conv1x1_forward.1} parent=27 // pred_fallthru
          _
        %150 = sfence
        %p151 = pneg %p42
        %p152 = pneg %p39
        %p153 = scmp.lt.s32.totalorder %s18, 1
        %s154 = scalar_select %p153, %s18, 1
        %p155 = scmp.lt.s32.totalorder %s19, 0
        %s156 = scalar_select %p155, %s19, 0
        %s157 = smul.addr %s154, 4
        %s158 = sadd.s32 %s156, %s157
        %s159 = smul.addr %s158, 2
        %s160 = scalar_lea.vmem %s1, %s159
        %p161 = pneg %p70
        %p162 = pneg %p67
        %p163 = pneg %p98
        %p164 = pneg %p95
        %p165 = scmp.lt.s32.totalorder %s18, 1
        %s166 = scalar_select %p165, %s18, 1
        %p167 = scmp.lt.s32.totalorder %s19, 0
        %s168 = scalar_select %p167, %s19, 0
        %s169 = sadd.s32 %s168, %s166
        %s170 = smul.addr %s169, 2
        %s171 = scalar_lea.vmem %s2, %s170
        %p172 = scmp.lt.s32.totalorder %s18, 1
        %s173 = scalar_select %p172, %s18, 1
        %p174 = scmp.lt.s32.totalorder %s19, 0
        %s175 = scalar_select %p174, %s19, 0
        %s176 = smul.addr %s173, 4
        %s177 = sadd.s32 %s175, %s176
        %s178 = smul.addr %s177, 2
        %s179 = scalar_lea.vmem %s1, %s178
        %p180 = scmp.lt.s32.totalorder %s18, 1
        %s181 = scalar_select %p180, %s18, 1
        %p182 = scmp.lt.s32.totalorder %s19, 0
        %s183 = scalar_select %p182, %s19, 0
        %s184 = sadd.s32 %s183, %s181
        %s185 = smul.addr %s184, 2
        %s186 = scalar_lea.vmem %s2, %s185
        %s187 = sld [smem:[#allocation2]]
        %v188 = vld [vmem:[%s179] sm:$0x3]
        %v189 = vstv %s187
        %v190 = vmul.f32 %v189, %v188
        %s191 = sld [smem:[#allocation2 + $0x1]]
        %s192 = scalar_lea.vmem %s179, 2
        %v193 = vld [vmem:[%s192] sm:$0x3]
        %v194 = vstv %s191
        %v195 = vmul.f32 %v194, %v193
        %v196 = vadd.f32 %v190, %v195
        %s197 = sld [smem:[#allocation2 + $0x2]]
        %s198 = scalar_lea.vmem %s179, 4
        %v199 = vld [vmem:[%s198] sm:$0x3]
        %v200 = vstv %s197
        %v201 = vmul.f32 %v200, %v199
        %v202 = vadd.f32 %v196, %v201
        %s203 = sld [smem:[#allocation2 + $0x3]]
        %s204 = scalar_lea.vmem %s179, 6
        %v205 = vld [vmem:[%s204] sm:$0x3]
        %v206 = vstv %s203
        %v207 = vmul.f32 %v206, %v205
        %v208 = vadd.f32 %v202, %v207
        %209 = vst [vmem:[%s186] sm:$0x3] %v208
        %p210 = scmp.lt.s32.totalorder %s18, 1
        %s211 = scalar_select %p210, %s18, 1
        %p212 = scmp.lt.s32.totalorder %s19, 0
        %s213 = scalar_select %p212, %s19, 0
        %s214 = sadd.s32 %s213, %s211
        %s215 = smul.addr %s214, 2
        %s216 = scalar_lea.vmem %s2, %s215
        // Predicated region
        $region33: #{conv1x1_forward.1} parent=27 // pred_check
          %p217 = pneg %p95
        $region34: #{conv1x1_forward.1} parent=27 // pred_check_branch
          %219 = sbr.rel (%p217) target = $region36
        $region35: #{conv1x1_forward.1} parent=27 // pred_region
          _
        $region36: #{conv1x1_forward.1} parent=27 // pred_fallthru
          _
      $region28: #{conv1x1_forward.1} parent=5 // pred_fallthru
        _
      %p220 = scmp.le.s32.totalorder 2, %s9
      // Predicated region
      $region37: #{conv1x1_forward.1} parent=5 // pred_check
        %p221 = pneg %p220
      $region38: #{conv1x1_forward.1} parent=5 // pred_check_branch
        %223 = sbr.rel (%p221) target = $region40
      $region39: #{conv1x1_forward.1} parent=5 // pred_region
        %s224 = ssub.s32 %s9, 2
        // Predicated region
        $region41: #{conv1x1_forward.1} parent=39 // pred_check
          %p225 = pneg %p101
        $region42: #{conv1x1_forward.1} parent=39 // pred_check_branch
          %227 = sbr.rel (%p225) target = $region44
        $region43: #{conv1x1_forward.1} parent=39 // pred_region
          %p228 = scmp.lt.s32.totalorder %s20, 1
          %s229 = scalar_select %p228, %s20, 1
          %p230 = scmp.lt.s32.totalorder %s21, 0
          %s231 = scalar_select %p230, %s21, 0
          %s232 = sadd.s32 %s231, %s229
          %s233 = smul.addr %s232, 2
          %s234 = scalar_lea.vmem %s2, %s233
        $region44: #{conv1x1_forward.1} parent=39 // pred_fallthru
          _
      $region40: #{conv1x1_forward.1} parent=5 // pred_fallthru
        _
    $region6: #{conv1x1_forward.1} parent=1 // loop_footer
      %s13 = sadd.s32 1, %s9
    $region7: #{conv1x1_forward.1} parent=1 // loop_footer_branch
      %8 = sbr.rel target = $region3
    $region8: #{conv1x1_forward.1} parent=1 // loop_exit
      _
    %235 = vsyncpa [#allocation3], 1
    %s236 = scalar_lea.sflag [#allocation3], 1
    %237 = vsyncpa %s236, 1

</llo_original>
